<compile_context>
chip_gen: v7x
topology: tpu7x:2x2x1
jax: 0.10.0
libtpu: 0.0.40
codegen_flags: <defaults>
</compile_context>

<pallas_src>
import functools
import math

import jax
import jax.numpy as jnp
from jax.experimental import pallas as pl
from jax.experimental.pallas import tpu as pltpu


def _round_up(x, m):
    return (x + m - 1) // m * m


def _add_attention_kernel(c_ref, s_ref, w_ref, v_ref, out_ref, probs_ref, *,
                          c_actual):
    # c_ref:     (Bt, Hp)        batch tile of cell_state_c      (matmul dtype)
    # s_ref:     (Bt, Cp, Hp)    batch tile of cell_states       (matmul dtype)
    # w_ref:     (Nw, Hp, 2Hp)   pre-transposed Linear weights   (matmul dtype)
    #                            Nw == 1 -> shared weight (Source quirk),
    #                            Nw == 2 -> [input_proj, cell_proj] (Target).
    # v_ref:     (1, 2Hp)        atten_v (f32, zero padded lanes)
    # out_ref:   (Bt, Hp)
    # probs_ref: (Bt, Cp)        lane-dense probabilities (f32)
    bt, c_p, h_p = s_ref.shape
    nw, _, two_h_p = w_ref.shape

    c = c_ref[...]                                   # (Bt, Hp)
    s = s_ref[...]                                   # (Bt, Cp, Hp)
    s_flat = s.reshape(bt * c_p, h_p)                # (Bt*Cp, Hp)  tile-aligned

    w_in = w_ref[0]
    w_cell = w_in if nw == 1 else w_ref[1]
    # Two MXU matmuls; the shared-weight case reuses the same VMEM-resident
    # RHS (no concat / result-slice copies).
    proj_c = jnp.dot(c, w_in, preferred_element_type=jnp.float32)        # (Bt, 2Hp)
    proj_s = jnp.dot(s_flat, w_cell, preferred_element_type=jnp.float32)  # (Bt*Cp, 2Hp)

    # tanh(W_in c + W_cell s) and the score lane-reduction, in f32.
    # TODO(synk): on v6e/v7x (bf16 VPU/EUP) this EUP-bound block can run in
    # bf16 with an f32 score accumulator for ~2x on the tanh path; keep f32
    # on v5e.
    t = jnp.tanh(proj_s.reshape(bt, c_p, two_h_p) + proj_c[:, None, :])
    v = v_ref[...]                                   # (1, 2Hp), padded lanes 0
    scores = jnp.sum(t * v, axis=-1)                 # (Bt, Cp)

    # Zero padding along C is NOT inert: mask padded cells out of the softmax.
    col = jax.lax.broadcasted_iota(jnp.int32, (bt, c_p), 1)
    scores = jnp.where(col < c_actual, scores, jnp.float32(-1e30))

    # Softmax over the cell (lane) axis.  Exact divide: probs sum to 1 and the
    # per-step cost is only Bt reciprocals (EUP is not the bottleneck here).
    m = jnp.max(scores, axis=-1, keepdims=True)      # (Bt, 1)
    e = jnp.exp(scores - m)                          # (Bt, Cp)
    probs = e / jnp.sum(e, axis=-1, keepdims=True)   # (Bt, Cp)

    # atten_output[b, :] = sum_c probs[b, c] * cell_states[b, c, :].
    # Padded cells have probs ~ 0, padded H lanes are zero.
    # TODO(synk): if a bundle dump shows XLU/VALU saturation on this broadcast
    # + sublane reduce at large C, switch to an MXU path (einsum 'bc,bch->bh')
    # and re-measure.
    out = jnp.sum(probs[:, :, None] * s.astype(jnp.float32), axis=1)     # (Bt, Hp)

    out_ref[...] = out.astype(out_ref.dtype)
    probs_ref[...] = probs


def _choose_bt(batch, c_p, h_p, two_h_p, itemsize, bgran):
    """Pick the per-step batch tile from a VMEM budget (v7x-safe)."""
    b_rounded = _round_up(batch, bgran)
    bt = min(b_rounded, 128)          # cap keeps f32 intermediates modest on v7x
    # v7x has 2 TensorCores: prefer >= 2 grid steps along the "parallel" batch
    # axis when the batch is big enough so both cores get work.
    if b_rounded >= 2 * bgran:
        bt = min(bt, _round_up(b_rounded // 2, bgran))

    def vmem_estimate(bt_):
        act = 2 * bt_ * (h_p + c_p * h_p) * itemsize            # 2x-buffered activations
        outs = 2 * bt_ * (h_p + c_p) * 4                        # 2x-buffered f32 outputs
        tmp = bt_ * (2 * c_p * two_h_p + two_h_p                # proj_s, t, proj_c
                     + 2 * c_p * h_p + h_p) * 4                 # s_f32, out
        return act + outs + tmp

    while bt > bgran and vmem_estimate(bt) > 20 * 1024 * 1024:
        bt -= bgran
    return bt


def add_attention_pallas(cell_state_c, cell_states, w_stack_t, atten_v, *,
                         matmul_dtype=jnp.bfloat16):
    """cell_state_c: (B, H); cell_states: (B, C, H);
       w_stack_t: (Nw, H, 2H) pre-transposed Linear weights (Nw in {1, 2});
       atten_v: (2H,).  Returns (atten_output (B, H), probs (B, C) float32)."""
    B, H = cell_state_c.shape
    _, C, _ = cell_states.shape
    nw = w_stack_t.shape[0]
    out_dtype = cell_state_c.dtype

    # ---- hardware-tile padding (lane-dense stores, full MXU tiles) ----
    h_p = _round_up(H, 128)
    two_h_p = _round_up(2 * H, 128)
    c_p = _round_up(C, 8)

    # Cast MXU operands / HBM streams once in the wrapper (not per grid step).
    if cell_state_c.dtype != matmul_dtype:
        cell_state_c = cell_state_c.astype(matmul_dtype)
        cell_states = cell_states.astype(matmul_dtype)
    w_stack_t = w_stack_t.astype(matmul_dtype)
    atten_v = atten_v.astype(jnp.float32)   # only used in f32 elementwise math

    itemsize = jnp.dtype(matmul_dtype).itemsize
    bgran = 16 if itemsize < 4 else 8       # bf16 sublane packing granule
    bt = _choose_bt(B, c_p, h_p, two_h_p, itemsize, bgran)
    bp = _round_up(B, bt)

    cell_state_c = jnp.pad(cell_state_c, ((0, bp - B), (0, h_p - H)))
    cell_states = jnp.pad(cell_states,
                          ((0, bp - B), (0, c_p - C), (0, h_p - H)))
    w_stack_t = jnp.pad(w_stack_t,
                        ((0, 0), (0, h_p - H), (0, two_h_p - 2 * H)))
    v2d = jnp.pad(atten_v, (0, two_h_p - 2 * H)).reshape(1, two_h_p)

    kernel = functools.partial(_add_attention_kernel, c_actual=C)
    out, probs = pl.pallas_call(
        kernel,
        out_shape=(
            jax.ShapeDtypeStruct((bp, h_p), out_dtype),
            jax.ShapeDtypeStruct((bp, c_p), jnp.float32),
        ),
        grid_spec=pltpu.PrefetchScalarGridSpec(
            num_scalar_prefetch=0,
            grid=(bp // bt,),
            in_specs=[
                pl.BlockSpec((bt, h_p), lambda b: (b, 0)),
                pl.BlockSpec((bt, c_p, h_p), lambda b: (b, 0, 0)),
                # Constant index_map -> the weights / atten_v are DMA'd once
                # across the whole grid.
                # TODO(synk): at production H, single-buffer these invariant
                # operands (pipeline_mode=pl.Buffered(1)) or stage them in a
                # persistent VMEM scratch to avoid double-buffer VMEM waste.
                pl.BlockSpec((nw, h_p, two_h_p), lambda b: (0, 0, 0)),
                pl.BlockSpec((1, two_h_p), lambda b: (0, 0)),
            ],
            out_specs=[
                pl.BlockSpec((bt, h_p), lambda b: (b, 0)),
                pl.BlockSpec((bt, c_p), lambda b: (b, 0)),   # lane-dense probs
            ],
        ),
        compiler_params=pltpu.CompilerParams(
            dimension_semantics=("parallel",),
            vmem_limit_bytes=32 * 1024 * 1024),
    )(cell_state_c, cell_states, w_stack_t, v2d)
    return out[:B, :H], probs[:B, :C]


def init_params(key, hidden_size):
    """Deterministic synthetic parameters matching the module's shapes."""
    ks = jax.random.split(key, 6)
    bound_lin = 1.0 / math.sqrt(hidden_size)          # nn.Linear default-ish
    bound_v = 1.0 / math.sqrt(2 * hidden_size)        # reset_parameter
    u = lambda k, shape, b: jax.random.uniform(k, shape, jnp.float32, -b, b)
    return {
        "W_input_S": u(ks[0], (2 * hidden_size, hidden_size), bound_lin),
        "W_cell_S":  u(ks[1], (2 * hidden_size, hidden_size), bound_lin),
        "atten_v_S": u(ks[2], (2 * hidden_size,), bound_v),
        "W_input_T": u(ks[3], (2 * hidden_size, hidden_size), bound_lin),
        "W_cell_T":  u(ks[4], (2 * hidden_size, hidden_size), bound_lin),
        "atten_v_T": u(ks[5], (2 * hidden_size,), bound_v),
    }


def compute_add_attention(domain_tag, cell_state_c, cell_states, params, *,
                          matmul_dtype=jnp.bfloat16):
    """Reproduces Compute_Add_Attention.forward."""
    if domain_tag == "Source":
        # NOTE: faithful reproduction of the original code's quirk:
        # cell_proj = self.input_proj_S in the Source branch.  Do NOT "fix".
        # The shared weight is passed once (Nw=1) -> one HBM->VMEM copy; the
        # kernel issues both matmuls against that single VMEM tile.
        w_stack = params["W_input_S"].T[None]                       # (1, H, 2H)
        atten_v = params["atten_v_S"]
    else:
        w_stack = jnp.stack([params["W_input_T"].T,
                             params["W_cell_T"].T], axis=0)         # (2, H, 2H)
        atten_v = params["atten_v_T"]
    return add_attention_pallas(cell_state_c, cell_states, w_stack, atten_v,
                                matmul_dtype=matmul_dtype)


def reference_forward(domain_tag, cell_state_c, cell_states, params):
    if domain_tag == "Source":
        w_input, w_cell, atten_v = (params["W_input_S"], params["W_input_S"],
                                    params["atten_v_S"])
    else:
        w_input, w_cell, atten_v = (params["W_input_T"], params["W_cell_T"],
                                    params["atten_v_T"])
    B, C, H = cell_states.shape
    atten_input = jnp.broadcast_to(cell_state_c[:, None, :], (B, C, H))
    net_in = jnp.einsum("bch,kh->bck", atten_input, w_input)
    net_cell = jnp.einsum("bch,kh->bck", cell_states, w_cell)
    scores = jnp.tanh(net_in + net_cell)
    scores = jnp.einsum("h,bch->bc", atten_v, scores)
    probs = jax.nn.softmax(scores, axis=1)
    out = jnp.einsum("bc,bch->bh", probs, cell_states)
    return out, probs


if __name__ == "__main__":
    B = 2
    hidden_size = 32
    entity_mask_S = [1, 1, 0, 1, 1]   # cell_num_S = 4
    entity_mask_T = [1, 0, 1, 1, 0]   # cell_num_T = 3
    C_S = sum(entity_mask_S)
    C_T = sum(entity_mask_T)

    key = jax.random.PRNGKey(0)
    kp, k1, k2, k3 = jax.random.split(key, 4)
    params = init_params(kp, hidden_size)

    cell_state_c = jax.random.normal(k1, (B, hidden_size), jnp.float32)
    cell_states_S = jax.random.normal(k2, (B, C_S, hidden_size), jnp.float32)
    cell_states_T = jax.random.normal(k3, (B, C_T, hidden_size), jnp.float32)

    # --- default path: bf16 MXU operands / HBM streams, f32 elementwise ---
    out_s, probs_s = compute_add_attention("Source", cell_state_c,
                                           cell_states_S, params)
    out_s, probs_s = jax.block_until_ready((out_s, probs_s))
    ref_out_s, ref_probs_s = reference_forward("Source", cell_state_c,
                                               cell_states_S, params)
    assert out_s.shape == (B, hidden_size) and probs_s.shape == (B, C_S)
    assert jnp.allclose(out_s, ref_out_s, atol=5e-2, rtol=5e-2)
    assert jnp.allclose(probs_s, ref_probs_s, atol=5e-2, rtol=5e-2)
    assert jnp.allclose(jnp.sum(probs_s, axis=-1), 1.0, atol=1e-4)

    out_t, probs_t = compute_add_attention("Target", cell_state_c,
                                           cell_states_T, params)
    out_t, probs_t = jax.block_until_ready((out_t, probs_t))
    ref_out_t, ref_probs_t = reference_forward("Target", cell_state_c,
                                               cell_states_T, params)
    assert out_t.shape == (B, hidden_size) and probs_t.shape == (B, C_T)
    assert jnp.allclose(out_t, ref_out_t, atol=5e-2, rtol=5e-2)
    assert jnp.allclose(probs_t, ref_probs_t, atol=5e-2, rtol=5e-2)
    assert jnp.allclose(jnp.sum(probs_t, axis=-1), 1.0, atol=1e-4)

    # --- f32 MXU operands (higher-precision path) ---
    out_f, probs_f = compute_add_attention("Source", cell_state_c,
                                           cell_states_S, params,
                                           matmul_dtype=jnp.float32)
    out_f, probs_f = jax.block_until_ready((out_f, probs_f))
    assert jnp.allclose(out_f, ref_out_s, atol=2e-2, rtol=2e-2)
    assert jnp.allclose(probs_f, ref_probs_s, atol=2e-2, rtol=2e-2)

    print("KERNEL_OK")
</pallas_src>

<mosaic_0001>
module attributes {stable_mosaic.version = 11 : i64} {
  func.func @_add_attention_kernel(%arg0: i32, %arg1: memref<16x128xbf16, #tpu.memory_space<vmem>>, %arg2: memref<16x8x128xbf16, #tpu.memory_space<vmem>>, %arg3: memref<1x128x128xbf16, #tpu.memory_space<vmem>>, %arg4: memref<1x128xf32, #tpu.memory_space<vmem>>, %arg5: memref<16x128xf32, #tpu.memory_space<vmem>>, %arg6: memref<16x8xf32, #tpu.memory_space<vmem>>) attributes {dimension_semantics = [#tpu.dimension_semantics<parallel>], iteration_bounds = array<i64: 1>, scalar_prefetch = 0 : i64, scratch_operands = 0 : i64, tpu.core_type = #tpu.core_type<tc>, window_params = [{transform_indices = @transform_0, window_bounds = array<i64: 16, 128>}, {transform_indices = @transform_1, window_bounds = array<i64: 16, 8, 128>}, {pipeline_mode = #tpu.pipeline_mode<synchronous>, transform_indices = @transform_2, window_bounds = array<i64: 1, 128, 128>}, {pipeline_mode = #tpu.pipeline_mode<synchronous>, transform_indices = @transform_3, window_bounds = array<i64: 1, 128>}, {transform_indices = @transform_4, window_bounds = array<i64: 16, 128>}, {transform_indices = @transform_5, window_bounds = array<i64: 16, 8>}]} {
    %c0 = arith.constant 0 : index
    %c0_0 = arith.constant 0 : index
    %0 = vector.load %arg1[%c0, %c0_0] : memref<16x128xbf16, #tpu.memory_space<vmem>>, vector<16x128xbf16>
    %c0_1 = arith.constant 0 : index
    %c0_2 = arith.constant 0 : index
    %c0_3 = arith.constant 0 : index
    %1 = vector.load %arg2[%c0_1, %c0_2, %c0_3] : memref<16x8x128xbf16, #tpu.memory_space<vmem>>, vector<16x8x128xbf16>
    %2 = vector.shape_cast %1 : vector<16x8x128xbf16> to vector<128x128xbf16>
    %c0_4 = arith.constant 0 : index
    %c0_5 = arith.constant 0 : index
    %c0_6 = arith.constant 0 : index
    %3 = vector.load %arg3[%c0_4, %c0_5, %c0_6] : memref<1x128x128xbf16, #tpu.memory_space<vmem>>, vector<1x128x128xbf16>
    %4 = vector.shape_cast %3 : vector<1x128x128xbf16> to vector<128x128xbf16>
    %cst = arith.constant dense<0.000000e+00> : vector<16x128xf32>
    %5 = tpu.matmul %0, %4, %cst {dimension_numbers = #tpu.dot_dimension_numbers<[1], [0], [0], [1], [0, 0, 1, 1], [], []>} : vector<16x128xbf16>, vector<128x128xbf16>, vector<16x128xf32> -> vector<16x128xf32>
    %cst_7 = arith.constant dense<0.000000e+00> : vector<128x128xf32>
    %6 = tpu.matmul %2, %4, %cst_7 {dimension_numbers = #tpu.dot_dimension_numbers<[1], [0], [0], [1], [0, 0, 1, 1], [], []>} : vector<128x128xbf16>, vector<128x128xbf16>, vector<128x128xf32> -> vector<128x128xf32>
    %7 = vector.shape_cast %6 : vector<128x128xf32> to vector<16x8x128xf32>
    %8 = vector.shape_cast %5 : vector<16x128xf32> to vector<16x1x128xf32>
    %9 = vector.broadcast %8 : vector<16x1x128xf32> to vector<16x8x128xf32>
    %10 = arith.addf %7, %9 : vector<16x8x128xf32>
    %11 = math.tanh %10 : vector<16x8x128xf32>
    %c0_8 = arith.constant 0 : index
    %c0_9 = arith.constant 0 : index
    %12 = vector.load %arg4[%c0_8, %c0_9] : memref<1x128xf32, #tpu.memory_space<vmem>>, vector<1x128xf32>
    %13 = vector.shape_cast %12 : vector<1x128xf32> to vector<1x1x128xf32>
    %14 = vector.broadcast %13 : vector<1x1x128xf32> to vector<16x8x128xf32>
    %15 = arith.mulf %11, %14 : vector<16x8x128xf32>
    %cst_10 = arith.constant dense<0.000000e+00> : vector<16x8xf32>
    %16 = vector.multi_reduction <add>, %15, %cst_10 [2] : vector<16x8x128xf32> to vector<16x8xf32>
    %17 = tpu.iota {dimensions = array<i32: 1>} : vector<16x8xi32>
    %c4_i32 = arith.constant 4 : i32
    %18 = vector.broadcast %c4_i32 : i32 to vector<16x8xi32>
    %19 = arith.cmpi slt, %17, %18 : vector<16x8xi32>
    %cst_11 = arith.constant -1.000000e+30 : f32
    %20 = vector.broadcast %cst_11 : f32 to vector<16x8xf32>
    %21 = arith.select %19, %16, %20 : vector<16x8xi1>, vector<16x8xf32>
    %cst_12 = arith.constant dense<0xFF800000> : vector<16xf32>
    %22 = vector.multi_reduction <maximumf>, %21, %cst_12 [1] : vector<16x8xf32> to vector<16xf32>
    %23 = vector.shape_cast %22 : vector<16xf32> to vector<16x1xf32>
    %24 = vector.broadcast %23 : vector<16x1xf32> to vector<16x8xf32>
    %25 = arith.subf %21, %24 : vector<16x8xf32>
    %26 = math.exp %25 : vector<16x8xf32>
    %cst_13 = arith.constant dense<0.000000e+00> : vector<16xf32>
    %27 = vector.multi_reduction <add>, %26, %cst_13 [1] : vector<16x8xf32> to vector<16xf32>
    %28 = vector.shape_cast %27 : vector<16xf32> to vector<16x1xf32>
    %29 = vector.broadcast %28 : vector<16x1xf32> to vector<16x8xf32>
    %30 = arith.divf %26, %29 : vector<16x8xf32>
    %31 = vector.shape_cast %30 : vector<16x8xf32> to vector<16x8x1xf32>
    %32 = arith.extf %1 : vector<16x8x128xbf16> to vector<16x8x128xf32>
    %33 = vector.broadcast %31 : vector<16x8x1xf32> to vector<16x8x128xf32>
    %34 = arith.mulf %33, %32 : vector<16x8x128xf32>
    %cst_14 = arith.constant dense<0.000000e+00> : vector<16x128xf32>
    %35 = vector.multi_reduction <add>, %34, %cst_14 [1] : vector<16x8x128xf32> to vector<16x128xf32>
    %c0_15 = arith.constant 0 : index
    %c0_16 = arith.constant 0 : index
    %36 = vector.load %arg5[%c0_15, %c0_16] : memref<16x128xf32, #tpu.memory_space<vmem>>, vector<16x128xf32>
    tpu.vector_store %arg5[%c0_15, %c0_16], %35 {strides = array<i32>} : memref<16x128xf32, #tpu.memory_space<vmem>>, vector<16x128xf32>,
    %c0_17 = arith.constant 0 : index
    %c0_18 = arith.constant 0 : index
    %37 = vector.load %arg6[%c0_17, %c0_18] : memref<16x8xf32, #tpu.memory_space<vmem>>, vector<16x8xf32>
    tpu.vector_store %arg6[%c0_17, %c0_18], %30 {strides = array<i32>} : memref<16x8xf32, #tpu.memory_space<vmem>>, vector<16x8xf32>,
    return
  }
  func.func @transform_0(%arg0: i32) -> (i32, i32) {
    %c0_i32 = arith.constant 0 : i32
    %c0_i32_0 = arith.constant 0 : i32
    return %arg0, %c0_i32 : i32, i32
  }
  func.func @transform_1(%arg0: i32) -> (i32, i32, i32) {
    %c0_i32 = arith.constant 0 : i32
    %c0_i32_0 = arith.constant 0 : i32
    %c0_i32_1 = arith.constant 0 : i32
    return %arg0, %c0_i32, %c0_i32_0 : i32, i32, i32
  }
  func.func @transform_2(%arg0: i32) -> (i32, i32, i32) {
    %c0_i32 = arith.constant 0 : i32
    %c0_i32_0 = arith.constant 0 : i32
    %c0_i32_1 = arith.constant 0 : i32
    %c0_i32_2 = arith.constant 0 : i32
    return %c0_i32, %c0_i32_0, %c0_i32_1 : i32, i32, i32
  }
  func.func @transform_3(%arg0: i32) -> (i32, i32) {
    %c0_i32 = arith.constant 0 : i32
    %c0_i32_0 = arith.constant 0 : i32
    %c0_i32_1 = arith.constant 0 : i32
    return %c0_i32, %c0_i32_0 : i32, i32
  }
  func.func @transform_4(%arg0: i32) -> (i32, i32) {
    %c0_i32 = arith.constant 0 : i32
    %c0_i32_0 = arith.constant 0 : i32
    return %arg0, %c0_i32 : i32, i32
  }
  func.func @transform_5(%arg0: i32) -> (i32, i32) {
    %c0_i32 = arith.constant 0 : i32
    %c0_i32_0 = arith.constant 0 : i32
    return %arg0, %c0_i32 : i32, i32
  }
}

</mosaic_0001>

<llo_original>
// kernel: tpu_custom_call.1
$region0: #{tpu_custom_call.1}
  #allocation0 [shape = 'u32[]', space=smem, size = 0x4, offset = 0x4, fixed_abs, tag = 'smem constant byte address 0x4 - core index']
  #allocation1 [shape = 'u32[144,128]{1,0:T(1,128)}', space=vmem, size = 0x12000, scoped, tag = 'internal scratch']
  %s0 = inlined_call_operand.hbm [shape: bf16[16,128], index: 0, kind: input, shape index: {}]
  %s1 = inlined_call_operand.hbm [shape: bf16[16,8,128], index: 1, kind: input, shape index: {}]
  %s2 = inlined_call_operand.hbm [shape: bf16[1,128,128], index: 2, kind: input, shape index: {}]
  %s3 = inlined_call_operand.vmem [shape: f32[1,128], index: 3, kind: input, shape index: {}]
  %s4 = inlined_call_operand.hbm [shape: f32[16,128], index: 4, kind: output, shape index: {0}]
  %s5 = inlined_call_operand.vmem [shape: f32[16,8], index: 5, kind: output, shape index: {1}]
  %6 = xla_tuple %s4, %s5
  %s7 = sld [smem:[#allocation0]]
  $region46: #{tpu_custom_call.1} parent=0
    _
  %s9 = ssub.s32 1, %s7
  %s10 = scalar_select 0, %s9, %s7
  $region1: #{tpu_custom_call.1} parent=0
    #allocation2 [shape = 'u8[4096]{0}', space=vmem, size = 0x1000, scoped, tag = 'input window, operand 0, single buffered']
    #allocation3 [shape = 's32[1]{0}', space=sflag, size = 0x4, scoped, tag = 'scoped memory for tpu_custom_call.1']
    #allocation4 [shape = 's32[1]{0}', space=sflag, size = 0x4, scoped, tag = 'scoped memory for tpu_custom_call.1']
    #allocation5 [shape = 'u8[32768]{0}', space=vmem, size = 0x8000, scoped, tag = 'input window, operand 1, single buffered']
    #allocation6 [shape = 's32[1]{0}', space=sflag, size = 0x4, scoped, tag = 'scoped memory for tpu_custom_call.1']
    #allocation7 [shape = 'u8[32768]{0}', space=vmem, size = 0x8000, scoped, tag = 'input window, operand 2, single buffered']
    #allocation8 [shape = 'u8[8192]{0}', space=vmem, size = 0x2000, scoped, tag = 'output window, operand 0, single buffered']
    %11 = vsyncpa [#allocation3], 0
    %12 = vsyncpa [#allocation6], 0
    %13 = vsyncpa [#allocation4], 0
    // Predicated region
    $region2: #{tpu_custom_call.1} parent=1 // pred_check
      _
    $region3: #{tpu_custom_call.1} parent=1 // pred_check_branch
      %15 = sbr.rel (0) target = $region5
    $region4: #{tpu_custom_call.1} parent=1 // pred_region
      %s17 = ssub.s32 128, 128
      %18 = vsyncadd [#allocation3], %s17
      %s19 = sshll.u32 [#allocation2], 4
      %s20 = int_to_ptr.vmem [resolvable:$true] %s19
      %25 = dma.hbm_to_vmem [thread:$0]  %s0, 128, %s20, [#allocation3], 64, 64, 4
    $region5: #{tpu_custom_call.1} parent=1 // pred_fallthru
      _
    // Predicated region
    $region6: #{tpu_custom_call.1} parent=1 // pred_check
      _
    $region7: #{tpu_custom_call.1} parent=1 // pred_check_branch
      %27 = sbr.rel (0) target = $region9
    $region8: #{tpu_custom_call.1} parent=1 // pred_region
      %s29 = ssub.s32 1024, 1024
      %30 = vsyncadd [#allocation6], %s29
      %s31 = sshll.u32 [#allocation5], 4
      %s32 = int_to_ptr.vmem [resolvable:$true] %s31
      %37 = dma.hbm_to_vmem [thread:$0]  %s1, 1024, %s32, [#allocation6], 64, 64, 4
    $region9: #{tpu_custom_call.1} parent=1 // pred_fallthru
      _
    // Predicated region
    $region10: #{tpu_custom_call.1} parent=1 // pred_check
      _
    $region11: #{tpu_custom_call.1} parent=1 // pred_check_branch
      %39 = sbr.rel (0) target = $region13
    $region12: #{tpu_custom_call.1} parent=1 // pred_region
      %s41 = ssub.s32 1024, 1024
      %42 = vsyncadd [#allocation6], %s41
      %s43 = sshll.u32 [#allocation7], 4
      %s44 = int_to_ptr.vmem [resolvable:$true] %s43
      %49 = dma.hbm_to_vmem [thread:$0]  %s2, 1024, %s44, [#allocation6], 64, 64, 4
    $region13: #{tpu_custom_call.1} parent=1 // pred_fallthru
      _
    // Predicated region
    $region14: #{tpu_custom_call.1} parent=1 // pred_check
      _
    $region15: #{tpu_custom_call.1} parent=1 // pred_check_branch
      %51 = sbr.rel (0) target = $region17
    $region16: #{tpu_custom_call.1} parent=1 // pred_region
      _
    $region17: #{tpu_custom_call.1} parent=1 // pred_fallthru
      _
    // Predicated region
    $region18: #{tpu_custom_call.1} parent=1 // pred_check
      _
    $region19: #{tpu_custom_call.1} parent=1 // pred_check_branch
      %53 = sbr.rel (0) target = $region21
    $region20: #{tpu_custom_call.1} parent=1 // pred_region
      %54 = dma.done [#allocation3], 128
    $region21: #{tpu_custom_call.1} parent=1 // pred_fallthru
      _
    // Predicated region
    $region22: #{tpu_custom_call.1} parent=1 // pred_check
      _
    $region23: #{tpu_custom_call.1} parent=1 // pred_check_branch
      %56 = sbr.rel (0) target = $region25
    $region24: #{tpu_custom_call.1} parent=1 // pred_region
      %57 = dma.done [#allocation6], 1024
    $region25: #{tpu_custom_call.1} parent=1 // pred_fallthru
      _
    // Predicated region
    $region26: #{tpu_custom_call.1} parent=1 // pred_check
      _
    $region27: #{tpu_custom_call.1} parent=1 // pred_check_branch
      %59 = sbr.rel (0) target = $region29
    $region28: #{tpu_custom_call.1} parent=1 // pred_region
      %60 = dma.done [#allocation6], 1024
    $region29: #{tpu_custom_call.1} parent=1 // pred_fallthru
      _
    %v62 = vld [vmem:[#allocation2] sm:$0xf]
    %v63 = vld [vmem:[#allocation2 + $0x4] sm:$0xf]
    %v64 = vld [vmem:[#allocation5] sm:$0xf]
    %v65 = vld [vmem:[#allocation5 + $0x4] sm:$0xf]
    %v66 = vld [vmem:[#allocation5 + $0x8] sm:$0xf]
    %v67 = vld [vmem:[#allocation5 + $0xc] sm:$0xf]
    %v68 = vld [vmem:[#allocation5 + $0x10] sm:$0xf]
    %v69 = vld [vmem:[#allocation5 + $0x14] sm:$0xf]
    %v70 = vld [vmem:[#allocation5 + $0x18] sm:$0xf]
    %v71 = vld [vmem:[#allocation5 + $0x1c] sm:$0xf]
    %v72 = vld [vmem:[#allocation5 + $0x20] sm:$0xf]
    %v73 = vld [vmem:[#allocation5 + $0x24] sm:$0xf]
    %v74 = vld [vmem:[#allocation5 + $0x28] sm:$0xf]
    %v75 = vld [vmem:[#allocation5 + $0x2c] sm:$0xf]
    %v76 = vld [vmem:[#allocation5 + $0x30] sm:$0xf]
    %v77 = vld [vmem:[#allocation5 + $0x34] sm:$0xf]
    %v78 = vld [vmem:[#allocation5 + $0x38] sm:$0xf]
    %v79 = vld [vmem:[#allocation5 + $0x3c] sm:$0xf]
    %v80 = vld [vmem:[#allocation7] sm:$0xf]
    %v81 = vld [vmem:[#allocation7 + $0x4] sm:$0xf]
    %v82 = vld [vmem:[#allocation7 + $0x8] sm:$0xf]
    %v83 = vld [vmem:[#allocation7 + $0xc] sm:$0xf]
    %v84 = vld [vmem:[#allocation7 + $0x10] sm:$0xf]
    %v85 = vld [vmem:[#allocation7 + $0x14] sm:$0xf]
    %v86 = vld [vmem:[#allocation7 + $0x18] sm:$0xf]
    %v87 = vld [vmem:[#allocation7 + $0x1c] sm:$0xf]
    %v88 = vld [vmem:[#allocation7 + $0x20] sm:$0xf]
    %v89 = vld [vmem:[#allocation7 + $0x24] sm:$0xf]
    %v90 = vld [vmem:[#allocation7 + $0x28] sm:$0xf]
    %v91 = vld [vmem:[#allocation7 + $0x2c] sm:$0xf]
    %v92 = vld [vmem:[#allocation7 + $0x30] sm:$0xf]
    %v93 = vld [vmem:[#allocation7 + $0x34] sm:$0xf]
    %v94 = vld [vmem:[#allocation7 + $0x38] sm:$0xf]
    %v95 = vld [vmem:[#allocation7 + $0x3c] sm:$0xf]
    %v98 = vunpack.c.l.b16 %v62
    %v99 = vunpack.c.l.b16 %v63
    %v100 = vpack.c.b16 %v99, %v98
    %v118 = vunpack.c.l.b16 %v80
    %v119 = vunpack.c.l.b16 %v81
    %v120 = vunpack.c.l.b16 %v82
    %v121 = vunpack.c.l.b16 %v83
    %v122 = vunpack.c.l.b16 %v84
    %v123 = vunpack.c.l.b16 %v85
    %v124 = vunpack.c.l.b16 %v86
    %v125 = vunpack.c.l.b16 %v87
    %v126 = vunpack.c.l.b16 %v88
    %v127 = vunpack.c.l.b16 %v89
    %v128 = vunpack.c.l.b16 %v90
    %v129 = vunpack.c.l.b16 %v91
    %v130 = vunpack.c.l.b16 %v92
    %v131 = vunpack.c.l.b16 %v93
    %v132 = vunpack.c.l.b16 %v94
    %v133 = vunpack.c.l.b16 %v95
    %v134 = vpack.c.b16 %v119, %v118
    %v135 = vpack.c.b16 %v121, %v120
    %v136 = vpack.c.b16 %v123, %v122
    %v137 = vpack.c.b16 %v125, %v124
    %v138 = vpack.c.b16 %v127, %v126
    %v139 = vpack.c.b16 %v129, %v128
    %v140 = vpack.c.b16 %v131, %v130
    %v141 = vpack.c.b16 %v133, %v132
    %150 = vmatprep.subr.bf16.mxu0 0
    %151 = vmatpush1.bf16.msra.mxu0 %v134
    %152 = vmatprep.subr.bf16.mxu0 0
    %153 = vmatpush1.bf16.msra.mxu0 %v135
    %154 = vmatprep.subr.bf16.mxu0 0
    %155 = vmatpush1.bf16.msra.mxu0 %v136
    %156 = vmatprep.subr.bf16.mxu0 0
    %157 = vmatpush1.bf16.msra.mxu0 %v137
    %158 = vmatprep.subr.bf16.mxu0 0
    %159 = vmatpush1.bf16.msra.mxu0 %v138
    %160 = vmatprep.subr.bf16.mxu0 0
    %161 = vmatpush1.bf16.msra.mxu0 %v139
    %162 = vmatprep.subr.bf16.mxu0 0
    %163 = vmatpush1.bf16.msra.mxu0 %v140
    %164 = vmatprep.subr.bf16.mxu0 0
    %165 = vmatpush1.bf16.msra.mxu0 %v141
    %166 = vmatprep.subr.bf16.mxu0 0
    %167 = vmatpush1.bf16.msra.mxu0 0
    %168 = vmatprep.subr.bf16.mxu0 0
    %169 = vmatpush1.bf16.msra.mxu0 0
    %170 = vmatprep.subr.bf16.mxu0 0
    %171 = vmatpush1.bf16.msra.mxu0 0
    %172 = vmatprep.subr.bf16.mxu0 0
    %173 = vmatpush1.bf16.msra.mxu0 0
    %174 = vmatprep.subr.bf16.mxu0 0
    %175 = vmatpush1.bf16.msra.mxu0 0
    %176 = vmatprep.subr.bf16.mxu0 0
    %177 = vmatpush1.bf16.msra.mxu0 0
    %178 = vmatprep.subr.bf16.mxu0 0
    %179 = vmatpush1.bf16.msra.mxu0 0
    %180 = vmatprep.subr.bf16.mxu0 0
    %181 = vmatpush1.bf16.msra.mxu0 0
    %182 = vmatprep.mubr.bf16.mxu0 0
    %183 = vmatmul.mubr.bf16.gmra.mrb[0].mxu0 %v100
    %v184 = vpop.f32.mrb[0].mxu0
    %v185 = vadd.f32 0.0, %v184
    %v186 = vpop.f32.mrb[0].mxu0
    %v187 = vpop.f32.mrb[0].mxu0
    %v188 = vadd.f32 0.0, %v187
    %v189 = vpop.f32.mrb[0].mxu0
    %190 = vdwg.mxu0
    %v207 = vunpack.c.l.b16 %v64
    %v208 = vunpack.c.l.b16 %v65
    %v209 = vunpack.c.l.b16 %v66
    %v210 = vunpack.c.l.b16 %v67
    %v211 = vunpack.c.l.b16 %v68
    %v212 = vunpack.c.l.b16 %v69
    %v213 = vunpack.c.l.b16 %v70
    %v214 = vunpack.c.l.b16 %v71
    %v215 = vunpack.c.l.b16 %v72
    %v216 = vunpack.c.l.b16 %v73
    %v217 = vunpack.c.l.b16 %v74
    %v218 = vunpack.c.l.b16 %v75
    %v219 = vunpack.c.l.b16 %v76
    %v220 = vunpack.c.l.b16 %v77
    %v221 = vunpack.c.l.b16 %v78
    %v222 = vunpack.c.l.b16 %v79
    %v223 = vpack.c.b16 %v208, %v207
    %v224 = vpack.c.b16 %v210, %v209
    %v225 = vpack.c.b16 %v212, %v211
    %v226 = vpack.c.b16 %v214, %v213
    %v227 = vpack.c.b16 %v216, %v215
    %v228 = vpack.c.b16 %v218, %v217
    %v229 = vpack.c.b16 %v220, %v219
    %v230 = vpack.c.b16 %v222, %v221
    %239 = vmatprep.subr.bf16.mxu0 0
    %240 = vmatpush1.bf16.msra.mxu0 %v134
    %241 = vmatprep.subr.bf16.mxu0 0
    %242 = vmatpush1.bf16.msra.mxu0 %v135
    %243 = vmatprep.subr.bf16.mxu0 0
    %244 = vmatpush1.bf16.msra.mxu0 %v136
    %245 = vmatprep.subr.bf16.mxu0 0
    %246 = vmatpush1.bf16.msra.mxu0 %v137
    %247 = vmatprep.subr.bf16.mxu0 0
    %248 = vmatpush1.bf16.msra.mxu0 %v138
    %249 = vmatprep.subr.bf16.mxu0 0
    %250 = vmatpush1.bf16.msra.mxu0 %v139
    %251 = vmatprep.subr.bf16.mxu0 0
    %252 = vmatpush1.bf16.msra.mxu0 %v140
    %253 = vmatprep.subr.bf16.mxu0 0
    %254 = vmatpush1.bf16.msra.mxu0 %v141
    %255 = vmatprep.subr.bf16.mxu0 0
    %256 = vmatpush1.bf16.msra.mxu0 0
    %257 = vmatprep.subr.bf16.mxu0 0
    %258 = vmatpush1.bf16.msra.mxu0 0
    %259 = vmatprep.subr.bf16.mxu0 0
    %260 = vmatpush1.bf16.msra.mxu0 0
    %261 = vmatprep.subr.bf16.mxu0 0
    %262 = vmatpush1.bf16.msra.mxu0 0
    %263 = vmatprep.subr.bf16.mxu0 0
    %264 = vmatpush1.bf16.msra.mxu0 0
    %265 = vmatprep.subr.bf16.mxu0 0
    %266 = vmatpush1.bf16.msra.mxu0 0
    %267 = vmatprep.subr.bf16.mxu0 0
    %268 = vmatpush1.bf16.msra.mxu0 0
    %269 = vmatprep.subr.bf16.mxu0 0
    %270 = vmatpush1.bf16.msra.mxu0 0
    %271 = vmatprep.mubr.bf16.mxu0 0
    %272 = vmatmul.mubr.bf16.gmra.mrb[0].mxu0 %v223
    %v273 = vpop.f32.mrb[0].mxu0
    %v274 = vadd.f32 0.0, %v273
    %v275 = vpop.f32.mrb[0].mxu0
    %v276 = vpop.f32.mrb[0].mxu0
    %v277 = vadd.f32 0.0, %v276
    %v278 = vpop.f32.mrb[0].mxu0
    %279 = vmatprep.mubr.bf16.mxu0 0
    %280 = vmatmul.mubr.bf16.gmra.mrb[0].mxu0 %v224
    %v281 = vpop.f32.mrb[0].mxu0
    %v282 = vadd.f32 0.0, %v281
    %v283 = vpop.f32.mrb[0].mxu0
    %v284 = vpop.f32.mrb[0].mxu0
    %v285 = vadd.f32 0.0, %v284
    %v286 = vpop.f32.mrb[0].mxu0
    %287 = vmatprep.mubr.bf16.mxu0 0
    %288 = vmatmul.mubr.bf16.gmra.mrb[0].mxu0 %v225
    %v289 = vpop.f32.mrb[0].mxu0
    %v290 = vadd.f32 0.0, %v289
    %v291 = vpop.f32.mrb[0].mxu0
    %v292 = vpop.f32.mrb[0].mxu0
    %v293 = vadd.f32 0.0, %v292
    %v294 = vpop.f32.mrb[0].mxu0
    %295 = vmatprep.mubr.bf16.mxu0 0
    %296 = vmatmul.mubr.bf16.gmra.mrb[0].mxu0 %v226
    %v297 = vpop.f32.mrb[0].mxu0
    %v298 = vadd.f32 0.0, %v297
    %v299 = vpop.f32.mrb[0].mxu0
    %v300 = vpop.f32.mrb[0].mxu0
    %v301 = vadd.f32 0.0, %v300
    %v302 = vpop.f32.mrb[0].mxu0
    %303 = vmatprep.mubr.bf16.mxu0 0
    %304 = vmatmul.mubr.bf16.gmra.mrb[0].mxu0 %v227
    %v305 = vpop.f32.mrb[0].mxu0
    %v306 = vadd.f32 0.0, %v305
    %v307 = vpop.f32.mrb[0].mxu0
    %v308 = vpop.f32.mrb[0].mxu0
    %v309 = vadd.f32 0.0, %v308
    %v310 = vpop.f32.mrb[0].mxu0
    %311 = vmatprep.mubr.bf16.mxu0 0
    %312 = vmatmul.mubr.bf16.gmra.mrb[0].mxu0 %v228
    %v313 = vpop.f32.mrb[0].mxu0
    %v314 = vadd.f32 0.0, %v313
    %v315 = vpop.f32.mrb[0].mxu0
    %v316 = vpop.f32.mrb[0].mxu0
    %v317 = vadd.f32 0.0, %v316
    %v318 = vpop.f32.mrb[0].mxu0
    %319 = vmatprep.mubr.bf16.mxu0 0
    %320 = vmatmul.mubr.bf16.gmra.mrb[0].mxu0 %v229
    %v321 = vpop.f32.mrb[0].mxu0
    %v322 = vadd.f32 0.0, %v321
    %v323 = vpop.f32.mrb[0].mxu0
    %v324 = vpop.f32.mrb[0].mxu0
    %v325 = vadd.f32 0.0, %v324
    %v326 = vpop.f32.mrb[0].mxu0
    %327 = vmatprep.mubr.bf16.mxu0 0
    %328 = vmatmul.mubr.bf16.gmra.mrb[0].mxu0 %v230
    %v329 = vpop.f32.mrb[0].mxu0
    %v330 = vadd.f32 0.0, %v329
    %v331 = vpop.f32.mrb[0].mxu0
    %v332 = vpop.f32.mrb[0].mxu0
    %v333 = vadd.f32 0.0, %v332
    %v334 = vpop.f32.mrb[0].mxu0
    %335 = vdwg.mxu0
    %v338 = vcombine.high %v185, %v185
    %v340 = vunpack.c.l.s4 1966171168
    %v341 = vunpack.c.0.s8 %v340
    %v342 = vlaneseq
    %v343 = vshrl.u32 %v342, 7
    %v344 = vsub.s32 %v341, %v343
    %v345 = vrot.slane %v185, %v344
    %v347 = vunpack.c.l.s4 1966171168
    %v348 = vunpack.c.0.s8 %v347
    %v349 = vlaneseq
    %v350 = vshrl.u32 %v349, 7
    %v351 = vsub.s32 %v348, %v350
    %v352 = vrot.slane %v338, %v351
    %v353 = vcombine.high %v345, %v345
    %v354 = vcombine.high %v352, %v352
    %v356 = vunpack.c.l.s4 1966171168
    %v357 = vunpack.c.0.s8 %v356
    %v358 = vlaneseq
    %v359 = vshrl.u32 %v358, 7
    %v360 = vsub.s32 %v357, %v359
    %v361 = vrot.slane %v345, %v360
    %v363 = vunpack.c.l.s4 1966171168
    %v364 = vunpack.c.0.s8 %v363
    %v365 = vlaneseq
    %v366 = vshrl.u32 %v365, 7
    %v367 = vsub.s32 %v364, %v366
    %v368 = vrot.slane %v352, %v367
    %v370 = vunpack.c.l.s4 1966171168
    %v371 = vunpack.c.0.s8 %v370
    %v372 = vlaneseq
    %v373 = vshrl.u32 %v372, 7
    %v374 = vsub.s32 %v371, %v373
    %v375 = vrot.slane %v353, %v374
    %v377 = vunpack.c.l.s4 1966171168
    %v378 = vunpack.c.0.s8 %v377
    %v379 = vlaneseq
    %v380 = vshrl.u32 %v379, 7
    %v381 = vsub.s32 %v378, %v380
    %v382 = vrot.slane %v354, %v381
    %v383 = vcombine.high %v361, %v361
    %v384 = vcombine.high %v368, %v368
    %v385 = vcombine.high %v375, %v375
    %v386 = vcombine.high %v382, %v382
    %v387 = vcombine.high %v188, %v188
    %v389 = vunpack.c.l.s4 1966171168
    %v390 = vunpack.c.0.s8 %v389
    %v391 = vlaneseq
    %v392 = vshrl.u32 %v391, 7
    %v393 = vsub.s32 %v390, %v392
    %v394 = vrot.slane %v188, %v393
    %v396 = vunpack.c.l.s4 1966171168
    %v397 = vunpack.c.0.s8 %v396
    %v398 = vlaneseq
    %v399 = vshrl.u32 %v398, 7
    %v400 = vsub.s32 %v397, %v399
    %v401 = vrot.slane %v387, %v400
    %v402 = vcombine.high %v394, %v394
    %v403 = vcombine.high %v401, %v401
    %v405 = vunpack.c.l.s4 1966171168
    %v406 = vunpack.c.0.s8 %v405
    %v407 = vlaneseq
    %v408 = vshrl.u32 %v407, 7
    %v409 = vsub.s32 %v406, %v408
    %v410 = vrot.slane %v394, %v409
    %v412 = vunpack.c.l.s4 1966171168
    %v413 = vunpack.c.0.s8 %v412
    %v414 = vlaneseq
    %v415 = vshrl.u32 %v414, 7
    %v416 = vsub.s32 %v413, %v415
    %v417 = vrot.slane %v401, %v416
    %v419 = vunpack.c.l.s4 1966171168
    %v420 = vunpack.c.0.s8 %v419
    %v421 = vlaneseq
    %v422 = vshrl.u32 %v421, 7
    %v423 = vsub.s32 %v420, %v422
    %v424 = vrot.slane %v402, %v423
    %v426 = vunpack.c.l.s4 1966171168
    %v427 = vunpack.c.0.s8 %v426
    %v428 = vlaneseq
    %v429 = vshrl.u32 %v428, 7
    %v430 = vsub.s32 %v427, %v429
    %v431 = vrot.slane %v403, %v430
    %v432 = vcombine.high %v410, %v410
    %v433 = vcombine.high %v417, %v417
    %v434 = vcombine.high %v424, %v424
    %v435 = vcombine.high %v431, %v431
    %v436 = vlaneseq
    %v437 = vshrl.u32 %v436, 7
    %v438 = vsub.s32 0, %v437
    %v439 = vrot.slane %v361, %v438
    %v440 = vlaneseq
    %v441 = vshrl.u32 %v440, 7
    %v442 = vsub.s32 0, %v441
    %v443 = vrot.slane %v375, %v442
    %v444 = vlaneseq
    %v445 = vshrl.u32 %v444, 7
    %v446 = vsub.s32 0, %v445
    %v447 = vrot.slane %v383, %v446
    %v448 = vlaneseq
    %v449 = vshrl.u32 %v448, 7
    %v450 = vsub.s32 0, %v449
    %v451 = vrot.slane %v385, %v450
    %v452 = vlaneseq
    %v453 = vshrl.u32 %v452, 7
    %v454 = vsub.s32 0, %v453
    %v455 = vrot.slane %v368, %v454
    %v456 = vlaneseq
    %v457 = vshrl.u32 %v456, 7
    %v458 = vsub.s32 0, %v457
    %v459 = vrot.slane %v382, %v458
    %v460 = vlaneseq
    %v461 = vshrl.u32 %v460, 7
    %v462 = vsub.s32 0, %v461
    %v463 = vrot.slane %v384, %v462
    %v464 = vlaneseq
    %v465 = vshrl.u32 %v464, 7
    %v466 = vsub.s32 0, %v465
    %v467 = vrot.slane %v386, %v466
    %v468 = vlaneseq
    %v469 = vshrl.u32 %v468, 7
    %v470 = vsub.s32 0, %v469
    %v471 = vrot.slane %v410, %v470
    %v472 = vlaneseq
    %v473 = vshrl.u32 %v472, 7
    %v474 = vsub.s32 0, %v473
    %v475 = vrot.slane %v424, %v474
    %v476 = vlaneseq
    %v477 = vshrl.u32 %v476, 7
    %v478 = vsub.s32 0, %v477
    %v479 = vrot.slane %v432, %v478
    %v480 = vlaneseq
    %v481 = vshrl.u32 %v480, 7
    %v482 = vsub.s32 0, %v481
    %v483 = vrot.slane %v434, %v482
    %v484 = vlaneseq
    %v485 = vshrl.u32 %v484, 7
    %v486 = vsub.s32 0, %v485
    %v487 = vrot.slane %v417, %v486
    %v488 = vlaneseq
    %v489 = vshrl.u32 %v488, 7
    %v490 = vsub.s32 0, %v489
    %v491 = vrot.slane %v431, %v490
    %v492 = vlaneseq
    %v493 = vshrl.u32 %v492, 7
    %v494 = vsub.s32 0, %v493
    %v495 = vrot.slane %v433, %v494
    %v496 = vlaneseq
    %v497 = vshrl.u32 %v496, 7
    %v498 = vsub.s32 0, %v497
    %v499 = vrot.slane %v435, %v498
    %v516 = vadd.f32 %v274, %v439
    %v517 = vadd.f32 %v277, %v443
    %v518 = vadd.f32 %v282, %v447
    %v519 = vadd.f32 %v285, %v451
    %v520 = vadd.f32 %v290, %v455
    %v521 = vadd.f32 %v293, %v459
    %v522 = vadd.f32 %v298, %v463
    %v523 = vadd.f32 %v301, %v467
    %v524 = vadd.f32 %v306, %v471
    %v525 = vadd.f32 %v309, %v475
    %v526 = vadd.f32 %v314, %v479
    %v527 = vadd.f32 %v317, %v483
    %v528 = vadd.f32 %v322, %v487
    %v529 = vadd.f32 %v325, %v491
    %v530 = vadd.f32 %v330, %v495
    %v531 = vadd.f32 %v333, %v499
    %v532 = vtanh.pop %v516
    %v533 = vtanh.pop %v517
    %v534 = vtanh.pop %v518
    %v535 = vtanh.pop %v519
    %v536 = vtanh.pop %v520
    %v537 = vtanh.pop %v521
    %v538 = vtanh.pop %v522
    %v539 = vtanh.pop %v523
    %v540 = vtanh.pop %v524
    %v541 = vtanh.pop %v525
    %v542 = vtanh.pop %v526
    %v543 = vtanh.pop %v527
    %v544 = vtanh.pop %v528
    %v545 = vtanh.pop %v529
    %v546 = vtanh.pop %v530
    %v547 = vtanh.pop %v531
    %v548 = vld [vmem:[%s3] sm:$0x1]
    %v550 = vlaneseq
    %v551 = vshrl.u32 %v550, 7
    %v552 = vsub.s32 0, %v551
    %v553 = vrot.slane %v548, %v552
    %v555 = vmul.f32 %v532, %v553
    %v556 = vmul.f32 %v533, %v553
    %v557 = vmul.f32 %v534, %v553
    %v558 = vmul.f32 %v535, %v553
    %v559 = vmul.f32 %v536, %v553
    %v560 = vmul.f32 %v537, %v553
    %v561 = vmul.f32 %v538, %v553
    %v562 = vmul.f32 %v539, %v553
    %v563 = vmul.f32 %v540, %v553
    %v564 = vmul.f32 %v541, %v553
    %v565 = vmul.f32 %v542, %v553
    %v566 = vmul.f32 %v543, %v553
    %v567 = vmul.f32 %v544, %v553
    %v568 = vmul.f32 %v545, %v553
    %v569 = vmul.f32 %v546, %v553
    %v570 = vmul.f32 %v547, %v553
    %571 = vadd.xlane.f32.xlu0 %v555
    %v572 = vpop.xlane.xlu0 %571
    %573 = vadd.xlane.f32.xlu0 %v556
    %v574 = vpop.xlane.xlu0 %573
    %575 = vadd.xlane.f32.xlu0 %v557
    %v576 = vpop.xlane.xlu0 %575
    %577 = vadd.xlane.f32.xlu0 %v558
    %v578 = vpop.xlane.xlu0 %577
    %579 = vadd.xlane.f32.xlu0 %v559
    %v580 = vpop.xlane.xlu0 %579
    %581 = vadd.xlane.f32.xlu0 %v560
    %v582 = vpop.xlane.xlu0 %581
    %583 = vadd.xlane.f32.xlu0 %v561
    %v584 = vpop.xlane.xlu0 %583
    %585 = vadd.xlane.f32.xlu0 %v562
    %v586 = vpop.xlane.xlu0 %585
    %587 = vadd.xlane.f32.xlu0 %v563
    %v588 = vpop.xlane.xlu0 %587
    %589 = vadd.xlane.f32.xlu0 %v564
    %v590 = vpop.xlane.xlu0 %589
    %591 = vadd.xlane.f32.xlu0 %v565
    %v592 = vpop.xlane.xlu0 %591
    %593 = vadd.xlane.f32.xlu0 %v566
    %v594 = vpop.xlane.xlu0 %593
    %595 = vadd.xlane.f32.xlu0 %v567
    %v596 = vpop.xlane.xlu0 %595
    %597 = vadd.xlane.f32.xlu0 %v568
    %v598 = vpop.xlane.xlu0 %597
    %599 = vadd.xlane.f32.xlu0 %v569
    %v600 = vpop.xlane.xlu0 %599
    %601 = vadd.xlane.f32.xlu0 %v570
    %v602 = vpop.xlane.xlu0 %601
    %v603 = vlaneseq
    %v604 = vand.u32 %v603, 127
    %vm605 = vcmp.lt.s32.totalorder %v604, 4
    %v622 = vlaneseq
    %v623 = vshrl.u32 %v622, 7
    %v624 = vsub.s32 %v604, %v623
    %v625 = vrot.slane %v572, %v624
    %v626 = vlaneseq
    %v627 = vshrl.u32 %v626, 7
    %v628 = vsub.s32 %v604, %v627
    %v629 = vrot.slane %v574, %v628
    %v630 = vlaneseq
    %v631 = vshrl.u32 %v630, 7
    %v632 = vsub.s32 %v604, %v631
    %v633 = vrot.slane %v576, %v632
    %v634 = vlaneseq
    %v635 = vshrl.u32 %v634, 7
    %v636 = vsub.s32 %v604, %v635
    %v637 = vrot.slane %v578, %v636
    %v638 = vlaneseq
    %v639 = vshrl.u32 %v638, 7
    %v640 = vsub.s32 %v604, %v639
    %v641 = vrot.slane %v580, %v640
    %v642 = vlaneseq
    %v643 = vshrl.u32 %v642, 7
    %v644 = vsub.s32 %v604, %v643
    %v645 = vrot.slane %v582, %v644
    %v646 = vlaneseq
    %v647 = vshrl.u32 %v646, 7
    %v648 = vsub.s32 %v604, %v647
    %v649 = vrot.slane %v584, %v648
    %v650 = vlaneseq
    %v651 = vshrl.u32 %v650, 7
    %v652 = vsub.s32 %v604, %v651
    %v653 = vrot.slane %v586, %v652
    %v654 = vlaneseq
    %v655 = vshrl.u32 %v654, 7
    %v656 = vsub.s32 %v604, %v655
    %v657 = vrot.slane %v588, %v656
    %v658 = vlaneseq
    %v659 = vshrl.u32 %v658, 7
    %v660 = vsub.s32 %v604, %v659
    %v661 = vrot.slane %v590, %v660
    %v662 = vlaneseq
    %v663 = vshrl.u32 %v662, 7
    %v664 = vsub.s32 %v604, %v663
    %v665 = vrot.slane %v592, %v664
    %v666 = vlaneseq
    %v667 = vshrl.u32 %v666, 7
    %v668 = vsub.s32 %v604, %v667
    %v669 = vrot.slane %v594, %v668
    %v670 = vlaneseq
    %v671 = vshrl.u32 %v670, 7
    %v672 = vsub.s32 %v604, %v671
    %v673 = vrot.slane %v596, %v672
    %v674 = vlaneseq
    %v675 = vshrl.u32 %v674, 7
    %v676 = vsub.s32 %v604, %v675
    %v677 = vrot.slane %v598, %v676
    %v678 = vlaneseq
    %v679 = vshrl.u32 %v678, 7
    %v680 = vsub.s32 %v604, %v679
    %v681 = vrot.slane %v600, %v680
    %v682 = vlaneseq
    %v683 = vshrl.u32 %v682, 7
    %v684 = vsub.s32 %v604, %v683
    %v685 = vrot.slane %v602, %v684
    %vm686 = vcmask 1041409
    %v687 = vsel %vm686, %v629, %v625
    %vm688 = vcmask 1042434
    %v689 = vsel %vm688, %v633, %v687
    %vm690 = vcmask 1043459
    %v691 = vsel %vm690, %v637, %v689
    %vm692 = vcmask 1044484
    %v693 = vsel %vm692, %v641, %v691
    %vm694 = vcmask 1045509
    %v695 = vsel %vm694, %v645, %v693
    %vm696 = vcmask 1046534
    %v697 = vsel %vm696, %v649, %v695
    %vm698 = vcmask 1047559
    %v699 = vsel %vm698, %v653, %v697
    %v700 = vsel %vm686, %v661, %v657
    %v701 = vsel %vm688, %v665, %v700
    %v702 = vsel %vm690, %v669, %v701
    %v703 = vsel %vm692, %v673, %v702
    %v704 = vsel %vm694, %v677, %v703
    %v705 = vsel %vm696, %v681, %v704
    %v706 = vsel %vm698, %v685, %v705
    %v709 = vsel %vm605, %v699, -1e+30
    %v710 = vsel %vm605, %v706, -1e+30
    %vm711 = vcmask 64512
    %v712 = vsel %vm711, %v709, -inf
    %713 = vmax.xlane.f32.xlu0 %v712
    %v714 = vpop.xlane.xlu0 %713
    %v715 = vsel %vm711, %v710, -inf
    %716 = vmax.xlane.f32.xlu0 %v715
    %v717 = vpop.xlane.xlu0 %716
    %v718 = vsub.f32 %v709, %v714
    %v719 = vsub.f32 %v710, %v717
    %v720 = vmul.f32 %v718, 1.442695
    %v721 = vpow.pop %v720
    %v722 = vmul.f32 %v719, 1.442695
    %v723 = vpow.pop %v722
    %v724 = vsel %vm711, %v721, 0.0
    %725 = vadd.xlane.f32.xlu0 %v724
    %v726 = vpop.xlane.xlu0 %725
    %v727 = vsel %vm711, %v723, 0.0
    %728 = vadd.xlane.f32.xlu0 %v727
    %v729 = vpop.xlane.xlu0 %728
    %v730 = vrcp.pop %v726
    %v731 = vmul.f32 %v721, %v730
    %v732 = vrcp.pop %v729
    %v733 = vmul.f32 %v723, %v732
    %v734 = vlaneseq
    %v735 = vshrl.u32 %v734, 7
    %v736 = vsub.s32 0, %v735
    %v737 = vrot.slane %v731, %v736
    %739 = vbcast.lane.b32.xlu0 %v737, 256
    %v740 = vpop.permute.xlu0 %739
    %v741 = vlaneseq
    %v742 = vshrl.u32 %v741, 7
    %v743 = vsub.s32 1, %v742
    %v744 = vrot.slane %v731, %v743
    %746 = vbcast.lane.b32.xlu0 %v744, 256
    %v747 = vpop.permute.xlu0 %746
    %v748 = vlaneseq
    %v749 = vshrl.u32 %v748, 7
    %v750 = vsub.s32 2, %v749
    %v751 = vrot.slane %v731, %v750
    %753 = vbcast.lane.b32.xlu0 %v751, 256
    %v754 = vpop.permute.xlu0 %753
    %v755 = vlaneseq
    %v756 = vshrl.u32 %v755, 7
    %v757 = vsub.s32 3, %v756
    %v758 = vrot.slane %v731, %v757
    %760 = vbcast.lane.b32.xlu0 %v758, 256
    %v761 = vpop.permute.xlu0 %760
    %v762 = vlaneseq
    %v763 = vshrl.u32 %v762, 7
    %v764 = vsub.s32 4, %v763
    %v765 = vrot.slane %v731, %v764
    %767 = vbcast.lane.b32.xlu0 %v765, 256
    %v768 = vpop.permute.xlu0 %767
    %v769 = vlaneseq
    %v770 = vshrl.u32 %v769, 7
    %v771 = vsub.s32 5, %v770
    %v772 = vrot.slane %v731, %v771
    %774 = vbcast.lane.b32.xlu0 %v772, 256
    %v775 = vpop.permute.xlu0 %774
    %v776 = vlaneseq
    %v777 = vshrl.u32 %v776, 7
    %v778 = vsub.s32 6, %v777
    %v779 = vrot.slane %v731, %v778
    %781 = vbcast.lane.b32.xlu0 %v779, 256
    %v782 = vpop.permute.xlu0 %781
    %v783 = vlaneseq
    %v784 = vshrl.u32 %v783, 7
    %v785 = vsub.s32 7, %v784
    %v786 = vrot.slane %v731, %v785
    %788 = vbcast.lane.b32.xlu0 %v786, 256
    %v789 = vpop.permute.xlu0 %788
    %v790 = vlaneseq
    %v791 = vshrl.u32 %v790, 7
    %v792 = vsub.s32 0, %v791
    %v793 = vrot.slane %v733, %v792
    %795 = vbcast.lane.b32.xlu0 %v793, 256
    %v796 = vpop.permute.xlu0 %795
    %v797 = vlaneseq
    %v798 = vshrl.u32 %v797, 7
    %v799 = vsub.s32 1, %v798
    %v800 = vrot.slane %v733, %v799
    %802 = vbcast.lane.b32.xlu0 %v800, 256
    %v803 = vpop.permute.xlu0 %802
    %v804 = vlaneseq
    %v805 = vshrl.u32 %v804, 7
    %v806 = vsub.s32 2, %v805
    %v807 = vrot.slane %v733, %v806
    %809 = vbcast.lane.b32.xlu0 %v807, 256
    %v810 = vpop.permute.xlu0 %809
    %v811 = vlaneseq
    %v812 = vshrl.u32 %v811, 7
    %v813 = vsub.s32 3, %v812
    %v814 = vrot.slane %v733, %v813
    %816 = vbcast.lane.b32.xlu0 %v814, 256
    %v817 = vpop.permute.xlu0 %816
    %v818 = vlaneseq
    %v819 = vshrl.u32 %v818, 7
    %v820 = vsub.s32 4, %v819
    %v821 = vrot.slane %v733, %v820
    %823 = vbcast.lane.b32.xlu0 %v821, 256
    %v824 = vpop.permute.xlu0 %823
    %v825 = vlaneseq
    %v826 = vshrl.u32 %v825, 7
    %v827 = vsub.s32 5, %v826
    %v828 = vrot.slane %v733, %v827
    %830 = vbcast.lane.b32.xlu0 %v828, 256
    %v831 = vpop.permute.xlu0 %830
    %v832 = vlaneseq
    %v833 = vshrl.u32 %v832, 7
    %v834 = vsub.s32 6, %v833
    %v835 = vrot.slane %v733, %v834
    %837 = vbcast.lane.b32.xlu0 %v835, 256
    %v838 = vpop.permute.xlu0 %837
    %v839 = vlaneseq
    %v840 = vshrl.u32 %v839, 7
    %v841 = vsub.s32 7, %v840
    %v842 = vrot.slane %v733, %v841
    %844 = vbcast.lane.b32.xlu0 %v842, 256
    %v845 = vpop.permute.xlu0 %844
    %v846 = vunpack.c.l.bf16 %v64
    %v847 = vunpack.c.l.bf16 %v65
    %v848 = vunpack.c.l.bf16 %v66
    %v849 = vunpack.c.l.bf16 %v67
    %v850 = vunpack.c.l.bf16 %v68
    %v851 = vunpack.c.l.bf16 %v69
    %v852 = vunpack.c.l.bf16 %v70
    %v853 = vunpack.c.l.bf16 %v71
    %v854 = vunpack.c.l.bf16 %v72
    %v855 = vunpack.c.l.bf16 %v73
    %v856 = vunpack.c.l.bf16 %v74
    %v857 = vunpack.c.l.bf16 %v75
    %v858 = vunpack.c.l.bf16 %v76
    %v859 = vunpack.c.l.bf16 %v77
    %v860 = vunpack.c.l.bf16 %v78
    %v861 = vunpack.c.l.bf16 %v79
    %v862 = vmul.f32 %v740, %v846
    %v863 = vmul.f32 %v747, %v847
    %v864 = vmul.f32 %v754, %v848
    %v865 = vmul.f32 %v761, %v849
    %v866 = vmul.f32 %v768, %v850
    %v867 = vmul.f32 %v775, %v851
    %v868 = vmul.f32 %v782, %v852
    %v869 = vmul.f32 %v789, %v853
    %v870 = vmul.f32 %v796, %v854
    %v871 = vmul.f32 %v803, %v855
    %v872 = vmul.f32 %v810, %v856
    %v873 = vmul.f32 %v817, %v857
    %v874 = vmul.f32 %v824, %v858
    %v875 = vmul.f32 %v831, %v859
    %v876 = vmul.f32 %v838, %v860
    %v877 = vmul.f32 %v845, %v861
    %v878 = vrot.slane %v862, 4
    %v879 = vadd.f32 %v862, %v878
    %v880 = vrot.slane %v879, 2
    %v881 = vadd.f32 %v879, %v880
    %v882 = vrot.slane %v881, 1
    %v883 = vadd.f32 %v881, %v882
    %v884 = vrot.slane %v863, 4
    %v885 = vadd.f32 %v863, %v884
    %v886 = vrot.slane %v885, 2
    %v887 = vadd.f32 %v885, %v886
    %v888 = vrot.slane %v887, 1
    %v889 = vadd.f32 %v887, %v888
    %v890 = vrot.slane %v864, 4
    %v891 = vadd.f32 %v864, %v890
    %v892 = vrot.slane %v891, 2
    %v893 = vadd.f32 %v891, %v892
    %v894 = vrot.slane %v893, 1
    %v895 = vadd.f32 %v893, %v894
    %v896 = vrot.slane %v865, 4
    %v897 = vadd.f32 %v865, %v896
    %v898 = vrot.slane %v897, 2
    %v899 = vadd.f32 %v897, %v898
    %v900 = vrot.slane %v899, 1
    %v901 = vadd.f32 %v899, %v900
    %v902 = vrot.slane %v866, 4
    %v903 = vadd.f32 %v866, %v902
    %v904 = vrot.slane %v903, 2
    %v905 = vadd.f32 %v903, %v904
    %v906 = vrot.slane %v905, 1
    %v907 = vadd.f32 %v905, %v906
    %v908 = vrot.slane %v867, 4
    %v909 = vadd.f32 %v867, %v908
    %v910 = vrot.slane %v909, 2
    %v911 = vadd.f32 %v909, %v910
    %v912 = vrot.slane %v911, 1
    %v913 = vadd.f32 %v911, %v912
    %v914 = vrot.slane %v868, 4
    %v915 = vadd.f32 %v868, %v914
    %v916 = vrot.slane %v915, 2
    %v917 = vadd.f32 %v915, %v916
    %v918 = vrot.slane %v917, 1
    %v919 = vadd.f32 %v917, %v918
    %v920 = vrot.slane %v869, 4
    %v921 = vadd.f32 %v869, %v920
    %v922 = vrot.slane %v921, 2
    %v923 = vadd.f32 %v921, %v922
    %v924 = vrot.slane %v923, 1
    %v925 = vadd.f32 %v923, %v924
    %v926 = vrot.slane %v870, 4
    %v927 = vadd.f32 %v870, %v926
    %v928 = vrot.slane %v927, 2
    %v929 = vadd.f32 %v927, %v928
    %v930 = vrot.slane %v929, 1
    %v931 = vadd.f32 %v929, %v930
    %v932 = vrot.slane %v871, 4
    %v933 = vadd.f32 %v871, %v932
    %v934 = vrot.slane %v933, 2
    %v935 = vadd.f32 %v933, %v934
    %v936 = vrot.slane %v935, 1
    %v937 = vadd.f32 %v935, %v936
    %v938 = vrot.slane %v872, 4
    %v939 = vadd.f32 %v872, %v938
    %v940 = vrot.slane %v939, 2
    %v941 = vadd.f32 %v939, %v940
    %v942 = vrot.slane %v941, 1
    %v943 = vadd.f32 %v941, %v942
    %v944 = vrot.slane %v873, 4
    %v945 = vadd.f32 %v873, %v944
    %v946 = vrot.slane %v945, 2
    %v947 = vadd.f32 %v945, %v946
    %v948 = vrot.slane %v947, 1
    %v949 = vadd.f32 %v947, %v948
    %v950 = vrot.slane %v874, 4
    %v951 = vadd.f32 %v874, %v950
    %v952 = vrot.slane %v951, 2
    %v953 = vadd.f32 %v951, %v952
    %v954 = vrot.slane %v953, 1
    %v955 = vadd.f32 %v953, %v954
    %v956 = vrot.slane %v875, 4
    %v957 = vadd.f32 %v875, %v956
    %v958 = vrot.slane %v957, 2
    %v959 = vadd.f32 %v957, %v958
    %v960 = vrot.slane %v959, 1
    %v961 = vadd.f32 %v959, %v960
    %v962 = vrot.slane %v876, 4
    %v963 = vadd.f32 %v876, %v962
    %v964 = vrot.slane %v963, 2
    %v965 = vadd.f32 %v963, %v964
    %v966 = vrot.slane %v965, 1
    %v967 = vadd.f32 %v965, %v966
    %v968 = vrot.slane %v877, 4
    %v969 = vadd.f32 %v877, %v968
    %v970 = vrot.slane %v969, 2
    %v971 = vadd.f32 %v969, %v970
    %v972 = vrot.slane %v971, 1
    %v973 = vadd.f32 %v971, %v972
    %v990 = vsel %vm686, %v889, %v883
    %v991 = vsel %vm688, %v895, %v990
    %v992 = vsel %vm690, %v901, %v991
    %v993 = vsel %vm692, %v907, %v992
    %v994 = vsel %vm694, %v913, %v993
    %v995 = vsel %vm696, %v919, %v994
    %v996 = vsel %vm698, %v925, %v995
    %v997 = vsel %vm686, %v937, %v931
    %v998 = vsel %vm688, %v943, %v997
    %v999 = vsel %vm690, %v949, %v998
    %v1000 = vsel %vm692, %v955, %v999
    %v1001 = vsel %vm694, %v961, %v1000
    %v1002 = vsel %vm696, %v967, %v1001
    %v1003 = vsel %vm698, %v973, %v1002
    %1006 = vst [vmem:[#allocation8] sm:$0xff] %v996
    %1007 = vst [vmem:[#allocation8 + $0x8] sm:$0xff] %v1003
    %1008 = vst.msk [vmem:[%s5] sm:$0xff] %vm711, %v731
    %1009 = vst.msk [vmem:[%s5 + $0x8] sm:$0xff] %vm711, %v733
    // Predicated region
    $region30: #{tpu_custom_call.1} parent=1 // pred_check
      _
    $region31: #{tpu_custom_call.1} parent=1 // pred_check_branch
      %1011 = sbr.rel (0) target = $region33
    $region32: #{tpu_custom_call.1} parent=1 // pred_region
      %s1013 = ssub.s32 256, 256
      %1014 = vsyncadd [#allocation4], %s1013
      %s1015 = sshll.u32 [#allocation8], 4
      %s1016 = int_to_ptr.vmem [resolvable:$true] %s1015
      %1021 = dma.vmem_to_hbm [thread:$0]  %s1016, 256, %s4, [#allocation4], 128, 128, 8
    $region33: #{tpu_custom_call.1} parent=1 // pred_fallthru
      _
    // Predicated region
    $region34: #{tpu_custom_call.1} parent=1 // pred_check
      _
    $region35: #{tpu_custom_call.1} parent=1 // pred_check_branch
      %1023 = sbr.rel (0) target = $region37
    $region36: #{tpu_custom_call.1} parent=1 // pred_region
      _
    $region37: #{tpu_custom_call.1} parent=1 // pred_fallthru
      _
    // Predicated region
    $region38: #{tpu_custom_call.1} parent=1 // pred_check
      _
    $region39: #{tpu_custom_call.1} parent=1 // pred_check_branch
      %1025 = sbr.rel (0) target = $region41
    $region40: #{tpu_custom_call.1} parent=1 // pred_region
      %1026 = dma.done [#allocation4], 256
    $region41: #{tpu_custom_call.1} parent=1 // pred_fallthru
      _
    // Predicated region
    $region42: #{tpu_custom_call.1} parent=1 // pred_check
      _
    $region43: #{tpu_custom_call.1} parent=1 // pred_check_branch
      %1028 = sbr.rel (0) target = $region45
    $region44: #{tpu_custom_call.1} parent=1 // pred_region
      _
    $region45: #{tpu_custom_call.1} parent=1 // pred_fallthru
      _
    %1029 = vsyncpa [#allocation3], 1
    %1030 = vsyncpa [#allocation6], 1
    %1031 = vsyncpa [#allocation4], 1

</llo_original>
